<compile_context>
chip_gen: v7x
topology: tpu7x:2x2x1
jax: 0.10.0
libtpu: 0.0.40
codegen_flags: <defaults>
</compile_context>

<pallas_src>
import math

import jax
import jax.numpy as jnp
from jax.experimental import pallas as pl
from jax.experimental.pallas import tpu as pltpu

_INV_SQRT2 = 1.0 / math.sqrt(2.0)
_SQRT_2_OVER_PI = math.sqrt(2.0 / math.pi)


def _gelu_exact(y):
    # HF "gelu": 0.5 * y * (1 + erf(y / sqrt(2)))
    return 0.5 * y * (1.0 + jax.lax.erf(y * _INV_SQRT2))


def _gelu_tanh(y):
    # "gelu_new" tanh approximation; tanh runs on the EUP (free slot).
    return 0.5 * y * (1.0 + jnp.tanh(_SQRT_2_OVER_PI * (y + 0.044715 * y * y * y)))


# TODO(synk): only GELU (exact erf, default) and tanh-approx GELU are
# implemented; other ACT2FN entries / arbitrary callables are not translated.


def _round_up(x, m):
    return ((x + m - 1) // m) * m


def _tpu_vmem_capacity():
    """Physical per-core VMEM in bytes, or a conservative default."""
    try:
        return int(pltpu.get_tpu_info().vmem_capacity_bytes)
    except Exception:
        return 64 << 20  # v7x per-TC size: safe lower bound on all generations


def _vmem_estimate(tm, tn, tk, x_item, w_item, o_item, has_mask,
                   w_bufs, vec_bufs):
    """Per-core VMEM footprint of the pipelined tiles + epilogue temporaries."""
    est = 2 * tm * tk * x_item                 # x tile, double buffered
    est += w_bufs * tk * tn * w_item           # weight tile
    n_vec = 2 if has_mask else 1
    est += vec_bufs * n_vec * tn * 4           # bias (+ mask), f32
    est += 2 * tm * tn * o_item                # output tile, double buffered
    est += tm * tn * 4                         # f32 dot result / accumulator
    est += 2 * tm * tn * 4                     # GELU / erf temporaries
    return est


def _make_kernel(has_mask, multi_k, act_fn, act_dtype):
    """Build the fused dense + bias (+mask) + GELU kernel body."""

    def epilogue(y, b, m, o_ref):
        y = y + b
        if has_mask:
            y = y * m
        # bf16 epilogue when the model dtype is bf16 (matches torch bf16
        # forward; halves VALU work on v6e/v7x), f32 otherwise.
        y = y.astype(act_dtype)
        o_ref[...] = act_fn(y).astype(o_ref.dtype)

    if not multi_k:
        # Single K step: no accumulator scratch, compute and store directly.
        if has_mask:
            def kernel(x_ref, w_ref, b_ref, m_ref, o_ref):
                y = jnp.dot(x_ref[...], w_ref[...],
                            preferred_element_type=jnp.float32)
                epilogue(y, b_ref[...], m_ref[...], o_ref)
        else:
            def kernel(x_ref, w_ref, b_ref, o_ref):
                y = jnp.dot(x_ref[...], w_ref[...],
                            preferred_element_type=jnp.float32)
                epilogue(y, b_ref[...], None, o_ref)
        return kernel

    # Multi-step K reduction: f32 accumulator scratch, epilogue on last step.
    if has_mask:
        def kernel(x_ref, w_ref, b_ref, m_ref, o_ref, acc_ref):
            k = pl.program_id(2)

            @pl.when(k == 0)
            def _init():
                acc_ref[...] = jnp.zeros_like(acc_ref)

            acc_ref[...] += jnp.dot(x_ref[...], w_ref[...],
                                    preferred_element_type=jnp.float32)

            @pl.when(k == pl.num_programs(2) - 1)
            def _fin():
                epilogue(acc_ref[...], b_ref[...], m_ref[...], o_ref)
    else:
        def kernel(x_ref, w_ref, b_ref, o_ref, acc_ref):
            k = pl.program_id(2)

            @pl.when(k == 0)
            def _init():
                acc_ref[...] = jnp.zeros_like(acc_ref)

            acc_ref[...] += jnp.dot(x_ref[...], w_ref[...],
                                    preferred_element_type=jnp.float32)

            @pl.when(k == pl.num_programs(2) - 1)
            def _fin():
                epilogue(acc_ref[...], b_ref[...], None, o_ref)
    return kernel


def roberta_intermediate(hidden_states, weight, bias, intermediate_mask=None,
                         *, tm=None, tn=None, tk=None, gelu_approx=False):
    """hidden_states: [B, S, H]; weight: [I, H] (PyTorch nn.Linear layout);
    bias: [I]; intermediate_mask: broadcastable to [I] or None."""
    B, S, H = hidden_states.shape
    I, H_w = weight.shape
    assert H_w == H
    M = B * S
    dtype = hidden_states.dtype
    x_item = jnp.dtype(dtype).itemsize
    w_item = jnp.dtype(weight.dtype).itemsize
    has_mask = intermediate_mask is not None

    cap_phys = _tpu_vmem_capacity()
    vmem_cap = int(cap_phys * 0.85)            # never request more than exists

    act_fn = _gelu_tanh if gelu_approx else _gelu_exact
    act_dtype = jnp.bfloat16 if dtype == jnp.bfloat16 else jnp.float32

    # ---- row tile -----------------------------------------------------------
    row_mult = max(8, 32 // x_item)            # sublane pack: 8 f32 / 16 bf16
    if tm is None:
        # Bigger tiles amortize per-step overhead; 512 on 128 MiB-VMEM parts
        # (v5e/v6e), 256 on v7x (64 MiB/TC).
        tm = 512 if cap_phys >= (100 << 20) else 256
    M_r = _round_up(M, row_mult)
    tm = _round_up(max(row_mult, min(tm, M_r)), row_mult)
    if M_r % tm == 0:
        M_pad = M_r
    else:
        # Ragged M: prefer shrinking tm to a divisor of the sublane-rounded M
        # over jnp.pad of the whole activation (an extra HBM copy of x).
        d = tm
        while d >= row_mult and M_r % d != 0:
            d -= row_mult
        if d >= min(128, M_r):
            tm, M_pad = d, M_r
        else:
            M_pad = _round_up(M, tm)           # fall back: pad the activation

    # ---- reduction / column tiles ------------------------------------------
    if tk is None:
        tk = H          # single K step -> no accumulator scratch needed
    else:
        assert tk % 128 == 0, "tk must be a multiple of 128"
    H_pad = _round_up(H, tk)

    if tn is None:
        tn = I          # full-width: lane-dense output stores, weight
                        # streamed from HBM exactly once (grid-constant block)
        # Shrink tn (keeping 256-lane alignment for the v6e/v7x 256x256 MXU)
        # if the resident footprint would not fit the per-core VMEM cap (v7x).
        while (_vmem_estimate(tm, tn, tk, x_item, w_item, x_item, has_mask,
                              w_bufs=2, vec_bufs=2) > vmem_cap
               and tn % 512 == 0 and tn // 2 >= 512):
            tn //= 2
    else:
        # Note: prefer multiples of 256 on v6e/v7x (256x256 MXU); 128 is the
        # hard requirement.
        assert tn % 128 == 0, "tn must be a multiple of 128"
    I_pad = _round_up(I, tn)

    # ---- pad operands (zero padding along K/N is exact for the matmul;
    # padded M rows and I columns are cropped from the output) ----------------
    x = hidden_states.reshape(M, H)
    if M_pad != M or H_pad != H:
        x = jnp.pad(x, ((0, M_pad - M), (0, H_pad - H)))
    # Pre-transpose the weight to [H, I] once in the wrapper (cheap, amortized
    # across layers / cached under jit) so the kernel never transposes it.
    w = weight.T
    if I_pad != I or H_pad != H:
        w = jnp.pad(w, ((0, H_pad - H), (0, I_pad - I)))
    b2 = bias.astype(jnp.float32).reshape(1, I)
    if I_pad != I:
        b2 = jnp.pad(b2, ((0, 0), (0, I_pad - I)))
    operands = [x, w, b2]
    if has_mask:
        m2 = intermediate_mask.astype(jnp.float32).reshape(1, I)
        if I_pad != I:
            m2 = jnp.pad(m2, ((0, 0), (0, I_pad - I)))
        operands.append(m2)

    grid_m, grid_n, grid_k = M_pad // tm, I_pad // tn, H_pad // tk
    multi_k = grid_k > 1

    # Grid order: N outer, M inner (weight blocks change only grid_n times so
    # weight HBM traffic stays ~1x even when tn < I), K last ("arbitrary").
    # Both N and M are "parallel" so the v7x dual-TC / megacore split can
    # shard whichever is non-trivial.
    w_const = (grid_n == 1 and grid_k == 1)    # weight block index grid-const
    vec_const = (grid_n == 1)                  # bias/mask block index grid-const

    def make_specs(single_buffer):
        w_kw = ({"pipeline_mode": pl.Buffered(1)}
                if (single_buffer and w_const) else {})
        v_kw = ({"pipeline_mode": pl.Buffered(1)}
                if (single_buffer and vec_const) else {})
        if multi_k:
            x_spec = pl.BlockSpec((tm, tk), lambda j, i, k: (i, k))
            w_spec = pl.BlockSpec((tk, tn), lambda j, i, k: (k, j), **w_kw)
            v_spec = pl.BlockSpec((1, tn), lambda j, i, k: (0, j), **v_kw)
            o_spec = pl.BlockSpec((tm, tn), lambda j, i, k: (i, j))
            grid = (grid_n, grid_m, grid_k)
            dims = ("parallel", "parallel", "arbitrary")
            scratch = [pltpu.VMEM((tm, tn), jnp.float32)]
        else:
            x_spec = pl.BlockSpec((tm, tk), lambda j, i: (i, 0))
            w_spec = pl.BlockSpec((tk, tn), lambda j, i: (0, j), **w_kw)
            v_spec = pl.BlockSpec((1, tn), lambda j, i: (0, j), **v_kw)
            o_spec = pl.BlockSpec((tm, tn), lambda j, i: (i, j))
            grid = (grid_n, grid_m)
            dims = ("parallel", "parallel")
            scratch = []
        in_specs = [x_spec, w_spec, v_spec] + ([v_spec] if has_mask else [])
        return grid, in_specs, o_spec, scratch, dims

    kernel = _make_kernel(has_mask, multi_k, act_fn, act_dtype)

    def run(single_buffer):
        grid, in_specs, o_spec, scratch, dims = make_specs(single_buffer)
        w_bufs = 1 if (single_buffer and w_const) else 2
        vec_bufs = 1 if (single_buffer and vec_const) else 2
        est = _vmem_estimate(tm, tn, tk, x_item, w_item, x_item, has_mask,
                             w_bufs, vec_bufs)
        vmem_limit = min(max(int(est * 1.2) + (2 << 20), 32 << 20), vmem_cap)
        return pl.pallas_call(
            kernel,
            out_shape=jax.ShapeDtypeStruct((M_pad, I_pad), dtype),
            grid_spec=pltpu.PrefetchScalarGridSpec(
                num_scalar_prefetch=0,
                grid=grid,
                in_specs=in_specs,
                out_specs=o_spec,
                scratch_shapes=scratch,
            ),
            compiler_params=pltpu.CompilerParams(
                dimension_semantics=dims,
                vmem_limit_bytes=vmem_limit,
            ),
        )(*operands)

    try:
        out = run(single_buffer=True)
    except Exception:
        # Graceful degradation if single-buffering (pl.Buffered(1)) is not
        # supported by this JAX version -- only costs VMEM, never correctness.
        out = run(single_buffer=False)

    if M_pad != M or I_pad != I:
        out = out[:M, :I]
    return out.reshape(B, S, I)


def _reference(hidden_states, weight, bias, intermediate_mask):
    y = jnp.einsum("bsh,ih->bsi", hidden_states, weight) + bias
    if intermediate_mask is not None:
        y = y * intermediate_mask
    return _gelu_exact(y)


if __name__ == "__main__":
    key = jax.random.PRNGKey(0)
    k1, k2, k3, k4, k5, k6, k7, k8 = jax.random.split(key, 8)

    # --- small RoBERTa-like config: hidden=32, intermediate=128, B=2, S=8 ----
    H, I = 32, 128
    B, S = 2, 8
    bound = 1.0 / math.sqrt(H)
    weight = jax.random.uniform(k1, (I, H), jnp.float32, -bound, bound)
    bias = jax.random.uniform(k2, (I,), jnp.float32, -bound, bound)
    hidden_states = jax.random.normal(k3, (B, S, H), jnp.float32)
    intermediate_mask = (jax.random.uniform(k4, (I,)) > 0.3).astype(jnp.float32)

    # 1) single-K path, with mask (grid-constant weight -> single-buffered)
    out = jax.block_until_ready(
        roberta_intermediate(hidden_states, weight, bias, intermediate_mask))
    ref = _reference(hidden_states, weight, bias, intermediate_mask)
    assert out.shape == (B, S, I)
    assert jnp.allclose(out, ref, atol=1e-5, rtol=1e-5)

    # 2) single-K path, mask=None (dedicated kernel variant, no ones-multiply)
    out2 = jax.block_until_ready(
        roberta_intermediate(hidden_states, weight, bias, None))
    ref2 = _reference(hidden_states, weight, bias, None)
    assert jnp.allclose(out2, ref2, atol=1e-5, rtol=1e-5)

    # 3) ragged-M path (S=7 -> M=14, rounded to the sublane multiple, cropped)
    hs_odd = jax.random.normal(k5, (B, 7, H), jnp.float32)
    out3 = jax.block_until_ready(
        roberta_intermediate(hs_odd, weight, bias, intermediate_mask))
    ref3 = _reference(hs_odd, weight, bias, intermediate_mask)
    assert out3.shape == (B, 7, I)
    assert jnp.allclose(out3, ref3, atol=1e-5, rtol=1e-5)

    # 4) multi-K reduction path (explicit tk < H), with and without mask
    H2, I2 = 256, 256
    bound2 = 1.0 / math.sqrt(H2)
    weight2 = jax.random.uniform(k6, (I2, H2), jnp.float32, -bound2, bound2)
    bias2 = jax.random.uniform(k7, (I2,), jnp.float32, -bound2, bound2)
    hs2 = jax.random.normal(k8, (B, S, H2), jnp.float32)
    mask2 = (jax.random.uniform(k4, (I2,)) > 0.3).astype(jnp.float32)

    out4 = jax.block_until_ready(
        roberta_intermediate(hs2, weight2, bias2, mask2, tm=8, tn=128, tk=128))
    ref4 = _reference(hs2, weight2, bias2, mask2)
    assert jnp.allclose(out4, ref4, atol=1e-5, rtol=1e-5)

    out5 = jax.block_until_ready(
        roberta_intermediate(hs2, weight2, bias2, None, tm=8, tn=128, tk=128))
    ref5 = _reference(hs2, weight2, bias2, None)
    assert jnp.allclose(out5, ref5, atol=1e-5, rtol=1e-5)

    print("KERNEL_OK")
</pallas_src>

<mosaic_0001>
module attributes {stable_mosaic.version = 11 : i64} {
  func.func @kernel(%arg0: i32, %arg1: i32, %arg2: memref<16x32xf32, #tpu.memory_space<vmem>>, %arg3: memref<32x128xf32, #tpu.memory_space<vmem>>, %arg4: memref<1x128xf32, #tpu.memory_space<vmem>>, %arg5: memref<1x128xf32, #tpu.memory_space<vmem>>, %arg6: memref<16x128xf32, #tpu.memory_space<vmem>>) attributes {dimension_semantics = [#tpu.dimension_semantics<parallel>, #tpu.dimension_semantics<parallel>], iteration_bounds = array<i64: 1, 1>, scalar_prefetch = 0 : i64, scratch_operands = 0 : i64, tpu.core_type = #tpu.core_type<tc>, window_params = [{transform_indices = @transform_0, window_bounds = array<i64: 16, 32>}, {pipeline_mode = #tpu.pipeline_mode<synchronous>, transform_indices = @transform_1, window_bounds = array<i64: 32, 128>}, {pipeline_mode = #tpu.pipeline_mode<synchronous>, transform_indices = @transform_2, window_bounds = array<i64: 1, 128>}, {pipeline_mode = #tpu.pipeline_mode<synchronous>, transform_indices = @transform_3, window_bounds = array<i64: 1, 128>}, {transform_indices = @transform_4, window_bounds = array<i64: 16, 128>}]} {
    %c0 = arith.constant 0 : index
    %c0_0 = arith.constant 0 : index
    %0 = vector.load %arg2[%c0, %c0_0] : memref<16x32xf32, #tpu.memory_space<vmem>>, vector<16x32xf32>
    %c0_1 = arith.constant 0 : index
    %c0_2 = arith.constant 0 : index
    %1 = vector.load %arg3[%c0_1, %c0_2] : memref<32x128xf32, #tpu.memory_space<vmem>>, vector<32x128xf32>
    %cst = arith.constant dense<0.000000e+00> : vector<16x128xf32>
    %2 = tpu.matmul %0, %1, %cst {dimension_numbers = #tpu.dot_dimension_numbers<[1], [0], [0], [1], [0, 0, 1, 1], [], []>} : vector<16x32xf32>, vector<32x128xf32>, vector<16x128xf32> -> vector<16x128xf32>
    %c0_3 = arith.constant 0 : index
    %c0_4 = arith.constant 0 : index
    %3 = vector.load %arg4[%c0_3, %c0_4] : memref<1x128xf32, #tpu.memory_space<vmem>>, vector<1x128xf32>
    %c0_5 = arith.constant 0 : index
    %c0_6 = arith.constant 0 : index
    %4 = vector.load %arg5[%c0_5, %c0_6] : memref<1x128xf32, #tpu.memory_space<vmem>>, vector<1x128xf32>
    %5 = vector.broadcast %3 : vector<1x128xf32> to vector<16x128xf32>
    %6 = arith.addf %2, %5 : vector<16x128xf32>
    %7 = vector.broadcast %4 : vector<1x128xf32> to vector<16x128xf32>
    %8 = arith.mulf %6, %7 : vector<16x128xf32>
    %cst_7 = arith.constant 5.000000e-01 : f32
    %9 = vector.broadcast %cst_7 : f32 to vector<16x128xf32>
    %10 = arith.mulf %9, %8 : vector<16x128xf32>
    %cst_8 = arith.constant 0.707106769 : f32
    %11 = vector.broadcast %cst_8 : f32 to vector<16x128xf32>
    %12 = arith.mulf %8, %11 : vector<16x128xf32>
    %13 = math.erf %12 : vector<16x128xf32>
    %cst_9 = arith.constant 1.000000e+00 : f32
    %14 = vector.broadcast %cst_9 : f32 to vector<16x128xf32>
    %15 = arith.addf %14, %13 : vector<16x128xf32>
    %16 = arith.mulf %10, %15 : vector<16x128xf32>
    %c0_10 = arith.constant 0 : index
    %c0_11 = arith.constant 0 : index
    %17 = vector.load %arg6[%c0_10, %c0_11] : memref<16x128xf32, #tpu.memory_space<vmem>>, vector<16x128xf32>
    tpu.vector_store %arg6[%c0_10, %c0_11], %16 {strides = array<i32>} : memref<16x128xf32, #tpu.memory_space<vmem>>, vector<16x128xf32>,
    return
  }
  func.func @transform_0(%arg0: i32, %arg1: i32) -> (i32, i32) {
    %c0_i32 = arith.constant 0 : i32
    %c0_i32_0 = arith.constant 0 : i32
    return %arg1, %c0_i32 : i32, i32
  }
  func.func @transform_1(%arg0: i32, %arg1: i32) -> (i32, i32) {
    %c0_i32 = arith.constant 0 : i32
    %c0_i32_0 = arith.constant 0 : i32
    return %c0_i32, %arg0 : i32, i32
  }
  func.func @transform_2(%arg0: i32, %arg1: i32) -> (i32, i32) {
    %c0_i32 = arith.constant 0 : i32
    %c0_i32_0 = arith.constant 0 : i32
    return %c0_i32, %arg0 : i32, i32
  }
  func.func @transform_3(%arg0: i32, %arg1: i32) -> (i32, i32) {
    %c0_i32 = arith.constant 0 : i32
    %c0_i32_0 = arith.constant 0 : i32
    return %c0_i32, %arg0 : i32, i32
  }
  func.func @transform_4(%arg0: i32, %arg1: i32) -> (i32, i32) {
    %c0_i32 = arith.constant 0 : i32
    return %arg1, %arg0 : i32, i32
  }
}

module attributes {stable_mosaic.version = 11 : i64} {
  func.func @kernel(%arg0: i32, %arg1: i32, %arg2: memref<16x32xf32, #tpu.memory_space<vmem>>, %arg3: memref<32x128xf32, #tpu.memory_space<vmem>>, %arg4: memref<1x128xf32, #tpu.memory_space<vmem>>, %arg5: memref<1x128xf32, #tpu.memory_space<vmem>>, %arg6: memref<16x128xf32, #tpu.memory_space<vmem>>) attributes {dimension_semantics = [#tpu.dimension_semantics<parallel>, #tpu.dimension_semantics<parallel>], iteration_bounds = array<i64: 1, 1>, scalar_prefetch = 0 : i64, scratch_operands = 0 : i64, tpu.core_type = #tpu.core_type<tc>, window_params = [{transform_indices = @transform_0, window_bounds = array<i64: 16, 32>}, {transform_indices = @transform_1, window_bounds = array<i64: 32, 128>}, {transform_indices = @transform_2, window_bounds = array<i64: 1, 128>}, {transform_indices = @transform_3, window_bounds = array<i64: 1, 128>}, {transform_indices = @transform_4, window_bounds = array<i64: 16, 128>}]} {
    %c0 = arith.constant 0 : index
    %c0_0 = arith.constant 0 : index
    %0 = vector.load %arg2[%c0, %c0_0] : memref<16x32xf32, #tpu.memory_space<vmem>>, vector<16x32xf32>
    %c0_1 = arith.constant 0 : index
    %c0_2 = arith.constant 0 : index
    %1 = vector.load %arg3[%c0_1, %c0_2] : memref<32x128xf32, #tpu.memory_space<vmem>>, vector<32x128xf32>
    %cst = arith.constant dense<0.000000e+00> : vector<16x128xf32>
    %2 = tpu.matmul %0, %1, %cst {dimension_numbers = #tpu.dot_dimension_numbers<[1], [0], [0], [1], [0, 0, 1, 1], [], []>} : vector<16x32xf32>, vector<32x128xf32>, vector<16x128xf32> -> vector<16x128xf32>
    %c0_3 = arith.constant 0 : index
    %c0_4 = arith.constant 0 : index
    %3 = vector.load %arg4[%c0_3, %c0_4] : memref<1x128xf32, #tpu.memory_space<vmem>>, vector<1x128xf32>
    %c0_5 = arith.constant 0 : index
    %c0_6 = arith.constant 0 : index
    %4 = vector.load %arg5[%c0_5, %c0_6] : memref<1x128xf32, #tpu.memory_space<vmem>>, vector<1x128xf32>
    %5 = vector.broadcast %3 : vector<1x128xf32> to vector<16x128xf32>
    %6 = arith.addf %2, %5 : vector<16x128xf32>
    %7 = vector.broadcast %4 : vector<1x128xf32> to vector<16x128xf32>
    %8 = arith.mulf %6, %7 : vector<16x128xf32>
    %cst_7 = arith.constant 5.000000e-01 : f32
    %9 = vector.broadcast %cst_7 : f32 to vector<16x128xf32>
    %10 = arith.mulf %9, %8 : vector<16x128xf32>
    %cst_8 = arith.constant 0.707106769 : f32
    %11 = vector.broadcast %cst_8 : f32 to vector<16x128xf32>
    %12 = arith.mulf %8, %11 : vector<16x128xf32>
    %13 = math.erf %12 : vector<16x128xf32>
    %cst_9 = arith.constant 1.000000e+00 : f32
    %14 = vector.broadcast %cst_9 : f32 to vector<16x128xf32>
    %15 = arith.addf %14, %13 : vector<16x128xf32>
    %16 = arith.mulf %10, %15 : vector<16x128xf32>
    %c0_10 = arith.constant 0 : index
    %c0_11 = arith.constant 0 : index
    %17 = vector.load %arg6[%c0_10, %c0_11] : memref<16x128xf32, #tpu.memory_space<vmem>>, vector<16x128xf32>
    tpu.vector_store %arg6[%c0_10, %c0_11], %16 {strides = array<i32>} : memref<16x128xf32, #tpu.memory_space<vmem>>, vector<16x128xf32>,
    return
  }
  func.func @transform_0(%arg0: i32, %arg1: i32) -> (i32, i32) {
    %c0_i32 = arith.constant 0 : i32
    %c0_i32_0 = arith.constant 0 : i32
    return %arg1, %c0_i32 : i32, i32
  }
  func.func @transform_1(%arg0: i32, %arg1: i32) -> (i32, i32) {
    %c0_i32 = arith.constant 0 : i32
    %c0_i32_0 = arith.constant 0 : i32
    return %c0_i32, %arg0 : i32, i32
  }
  func.func @transform_2(%arg0: i32, %arg1: i32) -> (i32, i32) {
    %c0_i32 = arith.constant 0 : i32
    %c0_i32_0 = arith.constant 0 : i32
    return %c0_i32, %arg0 : i32, i32
  }
  func.func @transform_3(%arg0: i32, %arg1: i32) -> (i32, i32) {
    %c0_i32 = arith.constant 0 : i32
    %c0_i32_0 = arith.constant 0 : i32
    return %c0_i32, %arg0 : i32, i32
  }
  func.func @transform_4(%arg0: i32, %arg1: i32) -> (i32, i32) {
    %c0_i32 = arith.constant 0 : i32
    return %arg1, %arg0 : i32, i32
  }
}

</mosaic_0001>

<llo_original>
// kernel: tpu_custom_call.1
$region0: #{tpu_custom_call.1}
  #allocation0 [shape = 'u32[]', space=smem, size = 0x4, offset = 0x4, fixed_abs, tag = 'smem constant byte address 0x4 - core index']
  #allocation1 [shape = 'u32[144,128]{1,0:T(1,128)}', space=vmem, size = 0x12000, scoped, tag = 'internal scratch']
  %s0 = inlined_call_operand.hbm [shape: f32[16,32], index: 0, kind: input, shape index: {}]
  %s1 = inlined_call_operand.hbm [shape: f32[32,128], index: 1, kind: input, shape index: {}]
  %s2 = inlined_call_operand.vmem [shape: f32[1,128], index: 2, kind: input, shape index: {}]
  %s3 = inlined_call_operand.vmem [shape: f32[1,128], index: 3, kind: input, shape index: {}]
  %s4 = inlined_call_operand.hbm [shape: f32[16,128], index: 4, kind: output, shape index: {}]
  %s5 = sld [smem:[#allocation0]]
  $region34: #{tpu_custom_call.1} parent=0
    _
  %s7 = ssub.s32 1, %s5
  %s8 = scalar_select 0, %s7, %s5
  $region1: #{tpu_custom_call.1} parent=0
    #allocation2 [shape = 'u8[8192]{0}', space=vmem, size = 0x2000, scoped, tag = 'input window, operand 0, single buffered']
    #allocation3 [shape = 's32[1]{0}', space=sflag, size = 0x4, scoped, tag = 'scoped memory for tpu_custom_call.1']
    #allocation4 [shape = 's32[1]{0}', space=sflag, size = 0x4, scoped, tag = 'scoped memory for tpu_custom_call.1']
    #allocation5 [shape = 'u8[16384]{0}', space=vmem, size = 0x4000, scoped, tag = 'input window, operand 1, single buffered']
    #allocation6 [shape = 's32[1]{0}', space=sflag, size = 0x4, scoped, tag = 'scoped memory for tpu_custom_call.1']
    #allocation7 [shape = 'u8[8192]{0}', space=vmem, size = 0x2000, scoped, tag = 'output window, operand 0, single buffered']
    %9 = vsyncpa [#allocation3], 0
    %10 = vsyncpa [#allocation6], 0
    %11 = vsyncpa [#allocation4], 0
    // Predicated region
    $region2: #{tpu_custom_call.1} parent=1 // pred_check
      _
    $region3: #{tpu_custom_call.1} parent=1 // pred_check_branch
      %13 = sbr.rel (0) target = $region5
    $region4: #{tpu_custom_call.1} parent=1 // pred_region
      %s15 = ssub.s32 256, 256
      %16 = vsyncadd [#allocation3], %s15
      %s17 = sshll.u32 [#allocation2], 4
      %s18 = int_to_ptr.vmem [resolvable:$true] %s17
      %23 = dma.hbm_to_vmem [thread:$0]  %s0, 256, %s18, [#allocation3], 128, 128, 8
    $region5: #{tpu_custom_call.1} parent=1 // pred_fallthru
      _
    // Predicated region
    $region6: #{tpu_custom_call.1} parent=1 // pred_check
      _
    $region7: #{tpu_custom_call.1} parent=1 // pred_check_branch
      %25 = sbr.rel (0) target = $region9
    $region8: #{tpu_custom_call.1} parent=1 // pred_region
      %s27 = ssub.s32 512, 512
      %28 = vsyncadd [#allocation6], %s27
      %s29 = sshll.u32 [#allocation5], 4
      %s30 = int_to_ptr.vmem [resolvable:$true] %s29
      %35 = dma.hbm_to_vmem [thread:$0]  %s1, 512, %s30, [#allocation6], 128, 128, 8
    $region9: #{tpu_custom_call.1} parent=1 // pred_fallthru
      _
    // Predicated region
    $region10: #{tpu_custom_call.1} parent=1 // pred_check
      _
    $region11: #{tpu_custom_call.1} parent=1 // pred_check_branch
      %37 = sbr.rel (0) target = $region13
    $region12: #{tpu_custom_call.1} parent=1 // pred_region
      _
    $region13: #{tpu_custom_call.1} parent=1 // pred_fallthru
      _
    // Predicated region
    $region14: #{tpu_custom_call.1} parent=1 // pred_check
      _
    $region15: #{tpu_custom_call.1} parent=1 // pred_check_branch
      %39 = sbr.rel (0) target = $region17
    $region16: #{tpu_custom_call.1} parent=1 // pred_region
      _
    $region17: #{tpu_custom_call.1} parent=1 // pred_fallthru
      _
    // Predicated region
    $region18: #{tpu_custom_call.1} parent=1 // pred_check
      _
    $region19: #{tpu_custom_call.1} parent=1 // pred_check_branch
      %41 = sbr.rel (0) target = $region21
    $region20: #{tpu_custom_call.1} parent=1 // pred_region
      %42 = dma.done [#allocation3], 256
    $region21: #{tpu_custom_call.1} parent=1 // pred_fallthru
      _
    // Predicated region
    $region22: #{tpu_custom_call.1} parent=1 // pred_check
      _
    $region23: #{tpu_custom_call.1} parent=1 // pred_check_branch
      %44 = sbr.rel (0) target = $region25
    $region24: #{tpu_custom_call.1} parent=1 // pred_region
      %45 = dma.done [#allocation6], 512
    $region25: #{tpu_custom_call.1} parent=1 // pred_fallthru
      _
    %v46 = vld [vmem:[#allocation2] sm:$0xff]
    %v47 = vld [vmem:[#allocation2 + $0x8] sm:$0xff]
    %v48 = vld [vmem:[#allocation5] sm:$0xff]
    %v49 = vld [vmem:[#allocation5 + $0x8] sm:$0xff]
    %v50 = vld [vmem:[#allocation5 + $0x10] sm:$0xff]
    %v51 = vld [vmem:[#allocation5 + $0x18] sm:$0xff]
    %v52 = vld [vmem:[%s2] sm:$0x1]
    %v53 = vld [vmem:[%s3] sm:$0x1]
    %v55 = vlaneseq
    %v56 = vshrl.u32 %v55, 7
    %v57 = vsub.s32 0, %v56
    %v58 = vrot.slane %v52, %v57
    %vm60 = vcmask 261120
    %v62 = vsel %vm60, %v46, 0
    %v65 = vsel %vm60, %v47, 0
    %67 = vmatprep.subr.mxu0 0.0
    %68 = vmatpush1.msra.mxu0 %v48
    %69 = vmatprep.subr.mxu0 0.0
    %70 = vmatpush1.msra.mxu0 %v49
    %71 = vmatprep.subr.mxu0 0.0
    %72 = vmatpush1.msra.mxu0 %v50
    %73 = vmatprep.subr.mxu0 0.0
    %74 = vmatpush1.msra.mxu0 %v51
    %75 = vmatprep.subr.mxu0 0.0
    %76 = vmatpush1.msra.mxu0 0.0
    %77 = vmatprep.subr.mxu0 0.0
    %78 = vmatpush1.msra.mxu0 0.0
    %79 = vmatprep.subr.mxu0 0.0
    %80 = vmatpush1.msra.mxu0 0.0
    %81 = vmatprep.subr.mxu0 0.0
    %82 = vmatpush1.msra.mxu0 0.0
    %83 = vmatprep.subr.mxu0 0.0
    %84 = vmatpush1.msra.mxu0 0.0
    %85 = vmatprep.subr.mxu0 0.0
    %86 = vmatpush1.msra.mxu0 0.0
    %87 = vmatprep.subr.mxu0 0.0
    %88 = vmatpush1.msra.mxu0 0.0
    %89 = vmatprep.subr.mxu0 0.0
    %90 = vmatpush1.msra.mxu0 0.0
    %91 = vmatprep.subr.mxu0 0.0
    %92 = vmatpush1.msra.mxu0 0.0
    %93 = vmatprep.subr.mxu0 0.0
    %94 = vmatpush1.msra.mxu0 0.0
    %95 = vmatprep.subr.mxu0 0.0
    %96 = vmatpush1.msra.mxu0 0.0
    %97 = vmatprep.subr.mxu0 0.0
    %98 = vmatpush1.msra.mxu0 0.0
    %99 = vmatprep.subr.mxu0 0.0
    %100 = vmatpush1.msra.mxu0 0.0
    %101 = vmatprep.subr.mxu0 0.0
    %102 = vmatpush1.msra.mxu0 0.0
    %103 = vmatprep.subr.mxu0 0.0
    %104 = vmatpush1.msra.mxu0 0.0
    %105 = vmatprep.subr.mxu0 0.0
    %106 = vmatpush1.msra.mxu0 0.0
    %107 = vmatprep.subr.mxu0 0.0
    %108 = vmatpush1.msra.mxu0 0.0
    %109 = vmatprep.subr.mxu0 0.0
    %110 = vmatpush1.msra.mxu0 0.0
    %111 = vmatprep.subr.mxu0 0.0
    %112 = vmatpush1.msra.mxu0 0.0
    %113 = vmatprep.subr.mxu0 0.0
    %114 = vmatpush1.msra.mxu0 0.0
    %115 = vmatprep.subr.mxu0 0.0
    %116 = vmatpush1.msra.mxu0 0.0
    %117 = vmatprep.subr.mxu0 0.0
    %118 = vmatpush1.msra.mxu0 0.0
    %119 = vmatprep.subr.mxu0 0.0
    %120 = vmatpush1.msra.mxu0 0.0
    %121 = vmatprep.subr.mxu0 0.0
    %122 = vmatpush1.msra.mxu0 0.0
    %123 = vmatprep.subr.mxu0 0.0
    %124 = vmatpush1.msra.mxu0 0.0
    %125 = vmatprep.subr.mxu0 0.0
    %126 = vmatpush1.msra.mxu0 0.0
    %127 = vmatprep.subr.mxu0 0.0
    %128 = vmatpush1.msra.mxu0 0.0
    %129 = vmatprep.subr.mxu0 0.0
    %130 = vmatpush1.msra.mxu0 0.0
    %131 = vmatprep.mubr.f32.mxu0 0.0
    %132 = vmatmul.mubr.f32.gmra.mrb[0].mxu0 %v62
    %v133 = vpop.f32.mrb[0].mxu0
    %v134 = vadd.f32 %v58, %v133
    %v135 = vpop.f32.mrb[0].mxu0
    %136 = vmatprep.mubr.f32.mxu0 0.0
    %137 = vmatmul.mubr.f32.gmra.mrb[0].mxu0 %v65
    %v138 = vpop.f32.mrb[0].mxu0
    %v139 = vadd.f32 %v58, %v138
    %v140 = vpop.f32.mrb[0].mxu0
    %141 = vdwg.mxu0
    %v143 = vlaneseq
    %v144 = vshrl.u32 %v143, 7
    %v145 = vsub.s32 0, %v144
    %v146 = vrot.slane %v53, %v145
    %v148 = vmul.f32 %v134, %v146
    %v149 = vmul.f32 %v139, %v146
    %v150 = vmul.f32 %v148, 0.5
    %v151 = vmul.f32 %v149, 0.5
    %v152 = vmul.f32 %v148, 0.70710677
    %v153 = vmul.f32 %v149, 0.70710677
    %v154 = verf.f32.pop %v152
    %v155 = verf.f32.pop %v153
    %v156 = vadd.f32 %v154, 1.0
    %v157 = vadd.f32 %v155, 1.0
    %v158 = vmul.f32 %v150, %v156
    %v159 = vmul.f32 %v151, %v157
    %160 = vst [vmem:[#allocation7] sm:$0xff] %v158
    %161 = vst [vmem:[#allocation7 + $0x8] sm:$0xff] %v159
    // Predicated region
    $region26: #{tpu_custom_call.1} parent=1 // pred_check
      _
    $region27: #{tpu_custom_call.1} parent=1 // pred_check_branch
      %163 = sbr.rel (0) target = $region29
    $region28: #{tpu_custom_call.1} parent=1 // pred_region
      %s165 = ssub.s32 256, 256
      %166 = vsyncadd [#allocation4], %s165
      %s167 = sshll.u32 [#allocation7], 4
      %s168 = int_to_ptr.vmem [resolvable:$true] %s167
      %173 = dma.vmem_to_hbm [thread:$0]  %s168, 256, %s4, [#allocation4], 128, 128, 8
    $region29: #{tpu_custom_call.1} parent=1 // pred_fallthru
      _
    // Predicated region
    $region30: #{tpu_custom_call.1} parent=1 // pred_check
      _
    $region31: #{tpu_custom_call.1} parent=1 // pred_check_branch
      %175 = sbr.rel (0) target = $region33
    $region32: #{tpu_custom_call.1} parent=1 // pred_region
      %176 = dma.done [#allocation4], 256
    $region33: #{tpu_custom_call.1} parent=1 // pred_fallthru
      _
    %177 = vsyncpa [#allocation3], 1
    %178 = vsyncpa [#allocation6], 1
    %179 = vsyncpa [#allocation4], 1

// kernel: tpu_custom_call.1
$region0: #{tpu_custom_call.1}
  #allocation0 [shape = 'u32[]', space=smem, size = 0x4, offset = 0x4, fixed_abs, tag = 'smem constant byte address 0x4 - core index']
  #allocation1 [shape = 'u32[144,128]{1,0:T(1,128)}', space=vmem, size = 0x12000, scoped, tag = 'internal scratch']
  %s0 = inlined_call_operand.hbm [shape: f32[16,32], index: 0, kind: input, shape index: {}]
  %s1 = inlined_call_operand.hbm [shape: f32[32,128], index: 1, kind: input, shape index: {}]
  %s2 = inlined_call_operand.vmem [shape: f32[1,128], index: 2, kind: input, shape index: {}]
  %s3 = inlined_call_operand.vmem [shape: f32[1,128], index: 3, kind: input, shape index: {}]
  %s4 = inlined_call_operand.hbm [shape: f32[16,128], index: 4, kind: output, shape index: {}]
  %s5 = sld [smem:[#allocation0]]
  $region34: #{tpu_custom_call.1} parent=0
    _
  %s7 = ssub.s32 1, %s5
  %s8 = scalar_select 0, %s7, %s5
  $region1: #{tpu_custom_call.1} parent=0
    #allocation2 [shape = 'u8[8192]{0}', space=vmem, size = 0x2000, scoped, tag = 'input window, operand 0, single buffered']
    #allocation3 [shape = 's32[1]{0}', space=sflag, size = 0x4, scoped, tag = 'scoped memory for tpu_custom_call.1']
    #allocation4 [shape = 's32[1]{0}', space=sflag, size = 0x4, scoped, tag = 'scoped memory for tpu_custom_call.1']
    #allocation5 [shape = 'u8[16384]{0}', space=vmem, size = 0x4000, scoped, tag = 'input window, operand 1, single buffered']
    #allocation6 [shape = 's32[1]{0}', space=sflag, size = 0x4, scoped, tag = 'scoped memory for tpu_custom_call.1']
    #allocation7 [shape = 'u8[8192]{0}', space=vmem, size = 0x2000, scoped, tag = 'output window, operand 0, single buffered']
    %9 = vsyncpa [#allocation3], 0
    %10 = vsyncpa [#allocation6], 0
    %11 = vsyncpa [#allocation4], 0
    // Predicated region
    $region2: #{tpu_custom_call.1} parent=1 // pred_check
      _
    $region3: #{tpu_custom_call.1} parent=1 // pred_check_branch
      %13 = sbr.rel (0) target = $region5
    $region4: #{tpu_custom_call.1} parent=1 // pred_region
      %s15 = ssub.s32 256, 256
      %16 = vsyncadd [#allocation3], %s15
      %s17 = sshll.u32 [#allocation2], 4
      %s18 = int_to_ptr.vmem [resolvable:$true] %s17
      %23 = dma.hbm_to_vmem [thread:$0]  %s0, 256, %s18, [#allocation3], 128, 128, 8
    $region5: #{tpu_custom_call.1} parent=1 // pred_fallthru
      _
    // Predicated region
    $region6: #{tpu_custom_call.1} parent=1 // pred_check
      _
    $region7: #{tpu_custom_call.1} parent=1 // pred_check_branch
      %25 = sbr.rel (0) target = $region9
    $region8: #{tpu_custom_call.1} parent=1 // pred_region
      %s27 = ssub.s32 512, 512
      %28 = vsyncadd [#allocation6], %s27
      %s29 = sshll.u32 [#allocation5], 4
      %s30 = int_to_ptr.vmem [resolvable:$true] %s29
      %35 = dma.hbm_to_vmem [thread:$0]  %s1, 512, %s30, [#allocation6], 128, 128, 8
    $region9: #{tpu_custom_call.1} parent=1 // pred_fallthru
      _
    // Predicated region
    $region10: #{tpu_custom_call.1} parent=1 // pred_check
      _
    $region11: #{tpu_custom_call.1} parent=1 // pred_check_branch
      %37 = sbr.rel (0) target = $region13
    $region12: #{tpu_custom_call.1} parent=1 // pred_region
      _
    $region13: #{tpu_custom_call.1} parent=1 // pred_fallthru
      _
    // Predicated region
    $region14: #{tpu_custom_call.1} parent=1 // pred_check
      _
    $region15: #{tpu_custom_call.1} parent=1 // pred_check_branch
      %39 = sbr.rel (0) target = $region17
    $region16: #{tpu_custom_call.1} parent=1 // pred_region
      _
    $region17: #{tpu_custom_call.1} parent=1 // pred_fallthru
      _
    // Predicated region
    $region18: #{tpu_custom_call.1} parent=1 // pred_check
      _
    $region19: #{tpu_custom_call.1} parent=1 // pred_check_branch
      %41 = sbr.rel (0) target = $region21
    $region20: #{tpu_custom_call.1} parent=1 // pred_region
      %42 = dma.done [#allocation3], 256
    $region21: #{tpu_custom_call.1} parent=1 // pred_fallthru
      _
    // Predicated region
    $region22: #{tpu_custom_call.1} parent=1 // pred_check
      _
    $region23: #{tpu_custom_call.1} parent=1 // pred_check_branch
      %44 = sbr.rel (0) target = $region25
    $region24: #{tpu_custom_call.1} parent=1 // pred_region
      %45 = dma.done [#allocation6], 512
    $region25: #{tpu_custom_call.1} parent=1 // pred_fallthru
      _
    %v46 = vld [vmem:[#allocation2] sm:$0xff]
    %v47 = vld [vmem:[#allocation2 + $0x8] sm:$0xff]
    %v48 = vld [vmem:[#allocation5] sm:$0xff]
    %v49 = vld [vmem:[#allocation5 + $0x8] sm:$0xff]
    %v50 = vld [vmem:[#allocation5 + $0x10] sm:$0xff]
    %v51 = vld [vmem:[#allocation5 + $0x18] sm:$0xff]
    %v52 = vld [vmem:[%s2] sm:$0x1]
    %v53 = vld [vmem:[%s3] sm:$0x1]
    %v55 = vlaneseq
    %v56 = vshrl.u32 %v55, 7
    %v57 = vsub.s32 0, %v56
    %v58 = vrot.slane %v52, %v57
    %vm60 = vcmask 261120
    %v62 = vsel %vm60, %v46, 0
    %v65 = vsel %vm60, %v47, 0
    %67 = vmatprep.subr.mxu0 0.0
    %68 = vmatpush1.msra.mxu0 %v48
    %69 = vmatprep.subr.mxu0 0.0
    %70 = vmatpush1.msra.mxu0 %v49
    %71 = vmatprep.subr.mxu0 0.0
    %72 = vmatpush1.msra.mxu0 %v50
    %73 = vmatprep.subr.mxu0 0.0
    %74 = vmatpush1.msra.mxu0 %v51
    %75 = vmatprep.subr.mxu0 0.0
    %76 = vmatpush1.msra.mxu0 0.0
    %77 = vmatprep.subr.mxu0 0.0
    %78 = vmatpush1.msra.mxu0 0.0
    %79 = vmatprep.subr.mxu0 0.0
    %80 = vmatpush1.msra.mxu0 0.0
    %81 = vmatprep.subr.mxu0 0.0
    %82 = vmatpush1.msra.mxu0 0.0
    %83 = vmatprep.subr.mxu0 0.0
    %84 = vmatpush1.msra.mxu0 0.0
    %85 = vmatprep.subr.mxu0 0.0
    %86 = vmatpush1.msra.mxu0 0.0
    %87 = vmatprep.subr.mxu0 0.0
    %88 = vmatpush1.msra.mxu0 0.0
    %89 = vmatprep.subr.mxu0 0.0
    %90 = vmatpush1.msra.mxu0 0.0
    %91 = vmatprep.subr.mxu0 0.0
    %92 = vmatpush1.msra.mxu0 0.0
    %93 = vmatprep.subr.mxu0 0.0
    %94 = vmatpush1.msra.mxu0 0.0
    %95 = vmatprep.subr.mxu0 0.0
    %96 = vmatpush1.msra.mxu0 0.0
    %97 = vmatprep.subr.mxu0 0.0
    %98 = vmatpush1.msra.mxu0 0.0
    %99 = vmatprep.subr.mxu0 0.0
    %100 = vmatpush1.msra.mxu0 0.0
    %101 = vmatprep.subr.mxu0 0.0
    %102 = vmatpush1.msra.mxu0 0.0
    %103 = vmatprep.subr.mxu0 0.0
    %104 = vmatpush1.msra.mxu0 0.0
    %105 = vmatprep.subr.mxu0 0.0
    %106 = vmatpush1.msra.mxu0 0.0
    %107 = vmatprep.subr.mxu0 0.0
    %108 = vmatpush1.msra.mxu0 0.0
    %109 = vmatprep.subr.mxu0 0.0
    %110 = vmatpush1.msra.mxu0 0.0
    %111 = vmatprep.subr.mxu0 0.0
    %112 = vmatpush1.msra.mxu0 0.0
    %113 = vmatprep.subr.mxu0 0.0
    %114 = vmatpush1.msra.mxu0 0.0
    %115 = vmatprep.subr.mxu0 0.0
    %116 = vmatpush1.msra.mxu0 0.0
    %117 = vmatprep.subr.mxu0 0.0
    %118 = vmatpush1.msra.mxu0 0.0
    %119 = vmatprep.subr.mxu0 0.0
    %120 = vmatpush1.msra.mxu0 0.0
    %121 = vmatprep.subr.mxu0 0.0
    %122 = vmatpush1.msra.mxu0 0.0
    %123 = vmatprep.subr.mxu0 0.0
    %124 = vmatpush1.msra.mxu0 0.0
    %125 = vmatprep.subr.mxu0 0.0
    %126 = vmatpush1.msra.mxu0 0.0
    %127 = vmatprep.subr.mxu0 0.0
    %128 = vmatpush1.msra.mxu0 0.0
    %129 = vmatprep.subr.mxu0 0.0
    %130 = vmatpush1.msra.mxu0 0.0
    %131 = vmatprep.mubr.f32.mxu0 0.0
    %132 = vmatmul.mubr.f32.gmra.mrb[0].mxu0 %v62
    %v133 = vpop.f32.mrb[0].mxu0
    %v134 = vadd.f32 %v58, %v133
    %v135 = vpop.f32.mrb[0].mxu0
    %136 = vmatprep.mubr.f32.mxu0 0.0
    %137 = vmatmul.mubr.f32.gmra.mrb[0].mxu0 %v65
    %v138 = vpop.f32.mrb[0].mxu0
    %v139 = vadd.f32 %v58, %v138
    %v140 = vpop.f32.mrb[0].mxu0
    %141 = vdwg.mxu0
    %v143 = vlaneseq
    %v144 = vshrl.u32 %v143, 7
    %v145 = vsub.s32 0, %v144
    %v146 = vrot.slane %v53, %v145
    %v148 = vmul.f32 %v134, %v146
    %v149 = vmul.f32 %v139, %v146
    %v150 = vmul.f32 %v148, 0.5
    %v151 = vmul.f32 %v149, 0.5
    %v152 = vmul.f32 %v148, 0.70710677
    %v153 = vmul.f32 %v149, 0.70710677
    %v154 = verf.f32.pop %v152
    %v155 = verf.f32.pop %v153
    %v156 = vadd.f32 %v154, 1.0
    %v157 = vadd.f32 %v155, 1.0
    %v158 = vmul.f32 %v150, %v156
    %v159 = vmul.f32 %v151, %v157
    %160 = vst [vmem:[#allocation7] sm:$0xff] %v158
    %161 = vst [vmem:[#allocation7 + $0x8] sm:$0xff] %v159
    // Predicated region
    $region26: #{tpu_custom_call.1} parent=1 // pred_check
      _
    $region27: #{tpu_custom_call.1} parent=1 // pred_check_branch
      %163 = sbr.rel (0) target = $region29
    $region28: #{tpu_custom_call.1} parent=1 // pred_region
      %s165 = ssub.s32 256, 256
      %166 = vsyncadd [#allocation4], %s165
      %s167 = sshll.u32 [#allocation7], 4
      %s168 = int_to_ptr.vmem [resolvable:$true] %s167
      %173 = dma.vmem_to_hbm [thread:$0]  %s168, 256, %s4, [#allocation4], 128, 128, 8
    $region29: #{tpu_custom_call.1} parent=1 // pred_fallthru
      _
    // Predicated region
    $region30: #{tpu_custom_call.1} parent=1 // pred_check
      _
    $region31: #{tpu_custom_call.1} parent=1 // pred_check_branch
      %175 = sbr.rel (0) target = $region33
    $region32: #{tpu_custom_call.1} parent=1 // pred_region
      %176 = dma.done [#allocation4], 256
    $region33: #{tpu_custom_call.1} parent=1 // pred_fallthru
      _
    %177 = vsyncpa [#allocation3], 1
    %178 = vsyncpa [#allocation6], 1
    %179 = vsyncpa [#allocation4], 1

</llo_original>
